<compile_context>
chip_gen: v5e
topology: v5e:2x2
jax: 0.10.0
libtpu: 0.0.40
codegen_flags: <defaults>
</compile_context>

<pallas_src>
import functools

import jax
import jax.numpy as jnp
from jax.experimental import pallas as pl
from jax.experimental.pallas import tpu as pltpu


def _round_up(x, m):
    return ((x + m - 1) // m) * m


def _pick_vmem_limit_bytes():
    """Generation-aware scoped-VMEM limit (96 MiB on v5e/v6e, <=48 MiB on v7x)."""
    try:
        cap = getattr(pltpu.get_tpu_info(), "vmem_capacity_bytes", None)
    except Exception:
        cap = None
    if not isinstance(cap, int) or cap <= 0:
        return 48 * 1024 * 1024                    # safe everywhere
    if cap >= 100 * 1024 * 1024:                   # v5e / v6e: 128 MiB physical
        return 96 * 1024 * 1024
    return min(48 * 1024 * 1024, (3 * cap) // 4)   # v7x: 64 MiB physical


def _focal_loss_kernel(logits_ref, targets_ref, out_ref, *, alpha, gamma,
                       reduction, n_rows, tile_n, tiles_per_core):
    if reduction in ("mean", "sum"):
        c = pl.program_id(0)                # core-split axis ("parallel")
        i = pl.program_id(1)                # reduction axis ("arbitrary")
        tile_id = c * tiles_per_core + i    # logical tile (may exceed num_tiles-1)
    else:
        i = pl.program_id(0)
        tile_id = i

    logits = logits_ref[...].astype(jnp.float32)      # (T, C), f32 math on-chip
    tgt = targets_ref[...]                            # (T, 1) int32

    # Fused, numerically stable log-softmax + target-logit extraction:
    #   ce = logsumexp(logits) - logits[target]
    #      = log(sum exp(logits - m)) - (logits[target] - m)   (row max m cancels)
    m = jnp.max(logits, axis=-1, keepdims=True)                          # (T, 1)
    shifted = logits - m                                                 # (T, C)
    sum_exp = jnp.sum(jnp.exp(shifted), axis=-1, keepdims=True)          # (T, 1)
    col_ids = jax.lax.broadcasted_iota(jnp.int32, shifted.shape, 1)      # (T, C)
    shifted_t = jnp.sum(jnp.where(col_ids == tgt, shifted, 0.0),
                        axis=-1, keepdims=True)                          # (T, 1)
    ce = jnp.log(sum_exp) - shifted_t                                    # (T, 1)

    pt = jnp.exp(-ce)                                                    # (T, 1)
    # Clamp: exp(-ce) can round slightly above 1 in f32; a float pow of a
    # negative base would return NaN.
    w = jnp.maximum(1.0 - pt, 0.0)

    gamma_f = float(gamma)
    if gamma_f == int(gamma_f) and 0.0 <= gamma_f <= 8.0:
        # Integer exponent: explicit VPU multiplies (avoids log+exp on the EUP).
        wg = jnp.ones_like(w)
        for _ in range(int(gamma_f)):
            wg = wg * w
    else:
        wg = jnp.power(w, jnp.float32(gamma_f))

    focal = jnp.float32(alpha) * wg * ce                                 # (T, 1)

    # Mask rows past N (partial last tile / clamped overflow tiles).  Keep this
    # a select: it must not propagate NaN/Inf from uninitialized padded rows.
    row = tile_id * tile_n + jax.lax.broadcasted_iota(jnp.int32, focal.shape, 0)
    focal = jnp.where(row < n_rows, focal, 0.0)

    if reduction in ("mean", "sum"):
        # One resident (1, 1) accumulator block per value of the parallel axis.
        @pl.when(i == 0)
        def _():
            out_ref[...] = jnp.zeros_like(out_ref)

        out_ref[...] += jnp.sum(focal, axis=0, keepdims=True)            # (1, 1)
        # Per-core partials are combined (and 'mean' normalized) in the wrapper.
    else:  # 'none'
        out_ref[...] = focal


def focal_loss(logits, targets, *, alpha=0.25, gamma=2.0, reduction="mean",
               tile_n=None, target_block_bytes=4 * 1024 * 1024):
    """Pallas TPU implementation of FocalLoss.forward.

    logits:  (N, C) float32 or bfloat16 unnormalized class scores
    targets: (N,)   integer class indices
    """
    if reduction not in ("mean", "sum", "none"):
        raise ValueError(f"unsupported reduction: {reduction!r}")

    N, C = logits.shape
    if not jnp.issubdtype(logits.dtype, jnp.floating):
        logits = logits.astype(jnp.float32)
    tgt = jnp.asarray(targets).astype(jnp.int32).reshape(N, 1)

    itemsize = jnp.dtype(logits.dtype).itemsize
    sub = 8 if itemsize >= 4 else 16            # sublane packing granule
    vmem_limit = _pick_vmem_limit_bytes()

    # --- VMEM-layout-aware tile sizing --------------------------------------
    # Per-row VMEM cost (lane-padded, double-buffered):
    #   logits (T, C):        round_up(C, 128) * itemsize bytes per row
    #   targets (T, 1) int32: pads to 128 lanes -> 512 B per row
    #   'none' out (T, 1) f32: another 512 B per row
    logits_row_bytes = _round_up(C, 128) * itemsize
    row_cost = (2 * logits_row_bytes + 2 * 512
                + (2 * 512 if reduction == "none" else 0))
    if tile_n is None:
        rows_target = max(sub, target_block_bytes // logits_row_bytes)
        rows_fit = max(sub, int(0.7 * vmem_limit) // row_cost)
        tile_n = int(min(rows_target, rows_fit))
    tile_n = int(min(tile_n, _round_up(N, sub)))
    tile_n = max(sub, (tile_n // sub) * sub)
    num_tiles = pl.cdiv(N, tile_n)

    if reduction in ("mean", "sum"):
        # 2-way core split so both v7x TensorCores participate in the reduction
        # path (harmless serial factor of 2 on 1-TC chips).
        n_split = 2 if num_tiles >= 2 else 1
        tiles_per_core = pl.cdiv(num_tiles, n_split)
        grid = (n_split, tiles_per_core)

        def row_block(c, i):
            # Clamp overflow tiles of an uneven split back in range; the
            # kernel's row mask zeroes their contribution.
            return (jnp.minimum(c * tiles_per_core + i, num_tiles - 1), 0)

        in_specs = [pl.BlockSpec((tile_n, C), row_block),
                    pl.BlockSpec((tile_n, 1), row_block)]
        out_shape = jax.ShapeDtypeStruct((n_split, 1), jnp.float32)
        out_specs = pl.BlockSpec((1, 1), lambda c, i: (c, 0))
        dim_sem = ("parallel", "arbitrary")
        out_bytes = n_split * 4
    else:  # 'none'
        tiles_per_core = num_tiles  # unused by the kernel in this branch
        grid = (num_tiles,)
        in_specs = [pl.BlockSpec((tile_n, C), lambda i: (i, 0)),
                    pl.BlockSpec((tile_n, 1), lambda i: (i, 0))]
        out_shape = jax.ShapeDtypeStruct((N, 1), jnp.float32)
        out_specs = pl.BlockSpec((tile_n, 1), lambda i: (i, 0))
        dim_sem = ("parallel",)
        out_bytes = N * 4

    kernel = functools.partial(
        _focal_loss_kernel,
        alpha=float(alpha), gamma=float(gamma), reduction=reduction,
        n_rows=N, tile_n=tile_n, tiles_per_core=tiles_per_core)

    cost = pl.CostEstimate(
        flops=10 * N * C,
        transcendentals=N * C + 3 * N,           # exp(shifted), exp(-ce), log
        bytes_accessed=N * C * itemsize + N * 4 + out_bytes)

    out = pl.pallas_call(
        kernel,
        out_shape=out_shape,
        grid=grid,
        in_specs=in_specs,
        out_specs=out_specs,
        compiler_params=pltpu.CompilerParams(
            dimension_semantics=dim_sem,
            vmem_limit_bytes=vmem_limit),
        cost_estimate=cost,
    )(logits, tgt)

    if reduction in ("mean", "sum"):
        total = jnp.sum(out)                     # combine per-core f32 partials
        return total / jnp.float32(N) if reduction == "mean" else total
    return out[:, 0]


def _reference_focal_loss(logits, targets, alpha, gamma, reduction="mean"):
    """Pure-JAX reference mirroring F.cross_entropy + focal weighting."""
    logp = jax.nn.log_softmax(logits.astype(jnp.float32), axis=-1)
    ce = -jnp.take_along_axis(logp, targets[:, None].astype(jnp.int32), axis=-1)[:, 0]
    pt = jnp.exp(-ce)
    fl = alpha * (1.0 - pt) ** gamma * ce
    if reduction == "mean":
        return fl.mean()
    if reduction == "sum":
        return fl.sum()
    return fl


if __name__ == "__main__":
    key = jax.random.PRNGKey(0)
    k1, k2 = jax.random.split(key)

    # Small batch of logits over 16 bird classes; N deliberately NOT a multiple
    # of any tile size used below so partial-tile masking is exercised.
    N, C = 50, 16
    alpha, gamma = 0.25, 2.0

    logits = jax.random.normal(k1, (N, C), dtype=jnp.float32)
    targets = jax.random.randint(k2, (N,), 0, C, dtype=jnp.int32)

    ref_mean = _reference_focal_loss(logits, targets, alpha, gamma, "mean")
    ref_sum = _reference_focal_loss(logits, targets, alpha, gamma, "sum")
    ref_none = _reference_focal_loss(logits, targets, alpha, gamma, "none")

    # 1) default (VMEM-aware) tiling -> single tile, mean reduction
    out_mean = jax.block_until_ready(
        focal_loss(logits, targets, alpha=alpha, gamma=gamma, reduction="mean"))
    assert jnp.allclose(out_mean, ref_mean, atol=1e-5, rtol=1e-5), (out_mean, ref_mean)

    # 2) multi-tile, even 2-way core split (tile_n=16 -> 4 tiles, 2 per core), mean
    out_mean_t = jax.block_until_ready(
        focal_loss(logits, targets, alpha=alpha, gamma=gamma,
                   reduction="mean", tile_n=16))
    assert jnp.allclose(out_mean_t, ref_mean, atol=1e-5, rtol=1e-5), (out_mean_t, ref_mean)

    # 3) odd tile count (tile_n=24 -> 3 tiles) -> exercises the clamped overflow
    #    tile of the 2-way split, sum reduction
    out_sum = jax.block_until_ready(
        focal_loss(logits, targets, alpha=alpha, gamma=gamma,
                   reduction="sum", tile_n=24))
    assert jnp.allclose(out_sum, ref_sum, atol=1e-4, rtol=1e-5), (out_sum, ref_sum)

    # 4) per-sample ('none') reduction, multi-tile with a partial last tile
    out_none = jax.block_until_ready(
        focal_loss(logits, targets, alpha=alpha, gamma=gamma,
                   reduction="none", tile_n=16))
    assert out_none.shape == (N,)
    assert jnp.allclose(out_none, ref_none, atol=1e-5, rtol=1e-5)

    # 5) bf16 logits accepted directly (upcast happens inside the kernel)
    logits_bf16 = logits.astype(jnp.bfloat16)
    out_bf16 = jax.block_until_ready(
        focal_loss(logits_bf16, targets, alpha=alpha, gamma=gamma, reduction="mean"))
    ref_bf16 = _reference_focal_loss(logits_bf16, targets, alpha, gamma, "mean")
    assert jnp.allclose(out_bf16, ref_bf16, atol=1e-5, rtol=1e-5), (out_bf16, ref_bf16)

    print("KERNEL_OK")
</pallas_src>

<mosaic_0001>
module attributes {stable_mosaic.version = 11 : i64} {
  func.func @_focal_loss_kernel(%arg0: i32, %arg1: i32, %arg2: memref<56x16xf32, #tpu.memory_space<vmem>>, %arg3: memref<56x1xi32, #tpu.memory_space<vmem>>, %arg4: memref<1x1xf32, #tpu.memory_space<vmem>>) attributes {dimension_semantics = [#tpu.dimension_semantics<parallel>, #tpu.dimension_semantics<arbitrary>], iteration_bounds = array<i64: 1, 1>, scalar_prefetch = 0 : i64, scratch_operands = 0 : i64, tpu.core_type = #tpu.core_type<tc>, window_params = [{transform_indices = @transform_0, window_bounds = array<i64: 56, 16>}, {transform_indices = @transform_1, window_bounds = array<i64: 56, 1>}, {transform_indices = @transform_2, window_bounds = array<i64: 1, 1>}]} {
    %c1_i32 = arith.constant 1 : i32
    %0 = arith.muli %arg0, %c1_i32 : i32
    %1 = arith.addi %0, %arg1 : i32
    %c0 = arith.constant 0 : index
    %c0_0 = arith.constant 0 : index
    %2 = vector.load %arg2[%c0, %c0_0] : memref<56x16xf32, #tpu.memory_space<vmem>>, vector<56x16xf32>
    %c0_1 = arith.constant 0 : index
    %c0_2 = arith.constant 0 : index
    %3 = vector.load %arg3[%c0_1, %c0_2] : memref<56x1xi32, #tpu.memory_space<vmem>>, vector<56x1xi32>
    %cst = arith.constant dense<0xFF800000> : vector<56xf32>
    %4 = vector.multi_reduction <maximumf>, %2, %cst [1] : vector<56x16xf32> to vector<56xf32>
    %5 = vector.shape_cast %4 : vector<56xf32> to vector<56x1xf32>
    %6 = vector.broadcast %5 : vector<56x1xf32> to vector<56x16xf32>
    %7 = arith.subf %2, %6 : vector<56x16xf32>
    %8 = math.exp %7 : vector<56x16xf32>
    %cst_3 = arith.constant dense<0.000000e+00> : vector<56xf32>
    %9 = vector.multi_reduction <add>, %8, %cst_3 [1] : vector<56x16xf32> to vector<56xf32>
    %10 = vector.shape_cast %9 : vector<56xf32> to vector<56x1xf32>
    %11 = tpu.iota {dimensions = array<i32: 1>} : vector<56x16xi32>
    %12 = vector.broadcast %3 : vector<56x1xi32> to vector<56x16xi32>
    %13 = arith.cmpi eq, %11, %12 : vector<56x16xi32>
    %cst_4 = arith.constant 0.000000e+00 : f32
    %14 = vector.broadcast %cst_4 : f32 to vector<56x16xf32>
    %15 = arith.select %13, %7, %14 : vector<56x16xi1>, vector<56x16xf32>
    %cst_5 = arith.constant dense<0.000000e+00> : vector<56xf32>
    %16 = vector.multi_reduction <add>, %15, %cst_5 [1] : vector<56x16xf32> to vector<56xf32>
    %17 = vector.shape_cast %16 : vector<56xf32> to vector<56x1xf32>
    %18 = math.log %10 : vector<56x1xf32>
    %19 = arith.subf %18, %17 : vector<56x1xf32>
    %cst_6 = arith.constant 0.000000e+00 : f32
    %20 = vector.broadcast %cst_6 : f32 to vector<56x1xf32>
    %21 = arith.subf %20, %19 : vector<56x1xf32>
    %22 = math.exp %21 : vector<56x1xf32>
    %cst_7 = arith.constant 1.000000e+00 : f32
    %23 = vector.broadcast %cst_7 : f32 to vector<56x1xf32>
    %24 = arith.subf %23, %22 : vector<56x1xf32>
    %cst_8 = arith.constant 0.000000e+00 : f32
    %25 = vector.broadcast %cst_8 : f32 to vector<56x1xf32>
    %26 = arith.maximumf %24, %25 : vector<56x1xf32>
    %cst_9 = arith.constant 1.000000e+00 : f32
    %27 = vector.broadcast %cst_9 : f32 to vector<56x1xf32>
    %28 = arith.mulf %27, %26 : vector<56x1xf32>
    %29 = arith.mulf %28, %26 : vector<56x1xf32>
    %cst_10 = arith.constant 2.500000e-01 : f32
    %30 = vector.broadcast %cst_10 : f32 to vector<56x1xf32>
    %31 = arith.mulf %30, %29 : vector<56x1xf32>
    %32 = arith.mulf %31, %19 : vector<56x1xf32>
    %c56_i32 = arith.constant 56 : i32
    %33 = arith.muli %1, %c56_i32 : i32
    %34 = tpu.iota {dimensions = array<i32: 0>} : vector<56x1xi32>
    %35 = vector.broadcast %33 : i32 to vector<56x1xi32>
    %36 = arith.addi %35, %34 : vector<56x1xi32>
    %c50_i32 = arith.constant 50 : i32
    %37 = vector.broadcast %c50_i32 : i32 to vector<56x1xi32>
    %38 = arith.cmpi slt, %36, %37 : vector<56x1xi32>
    %cst_11 = arith.constant 0.000000e+00 : f32
    %39 = vector.broadcast %cst_11 : f32 to vector<56x1xf32>
    %40 = arith.select %38, %32, %39 : vector<56x1xi1>, vector<56x1xf32>
    %c0_i32 = arith.constant 0 : i32
    %41 = arith.cmpi eq, %arg1, %c0_i32 : i32
    %42 = arith.extui %41 : i1 to i32
    %c0_i32_12 = arith.constant 0 : i32
    %43 = arith.cmpi ne, %42, %c0_i32_12 : i32
    scf.if %43 {
      %cst_18 = arith.constant 0.000000e+00 : f32
      %49 = vector.broadcast %cst_18 : f32 to vector<1x1xf32>
      %c0_19 = arith.constant 0 : index
      %c0_20 = arith.constant 0 : index
      %50 = vector.load %arg4[%c0_19, %c0_20] : memref<1x1xf32, #tpu.memory_space<vmem>>, vector<1x1xf32>
      tpu.vector_store %arg4[%c0_19, %c0_20], %49 {strides = array<i32>} : memref<1x1xf32, #tpu.memory_space<vmem>>, vector<1x1xf32>,
    } else {
    }
    %c0_13 = arith.constant 0 : index
    %c0_14 = arith.constant 0 : index
    %44 = vector.load %arg4[%c0_13, %c0_14] : memref<1x1xf32, #tpu.memory_space<vmem>>, vector<1x1xf32>
    %cst_15 = arith.constant dense<0.000000e+00> : vector<1xf32>
    %45 = vector.multi_reduction <add>, %40, %cst_15 [0] : vector<56x1xf32> to vector<1xf32>
    %46 = vector.shape_cast %45 : vector<1xf32> to vector<1x1xf32>
    %47 = arith.addf %44, %46 : vector<1x1xf32>
    %c0_16 = arith.constant 0 : index
    %c0_17 = arith.constant 0 : index
    %48 = vector.load %arg4[%c0_16, %c0_17] : memref<1x1xf32, #tpu.memory_space<vmem>>, vector<1x1xf32>
    tpu.vector_store %arg4[%c0_16, %c0_17], %47 {strides = array<i32>} : memref<1x1xf32, #tpu.memory_space<vmem>>, vector<1x1xf32>,
    return
  }
  func.func @transform_0(%arg0: i32, %arg1: i32) -> (i32, i32) {
    %c1_i32 = arith.constant 1 : i32
    %0 = arith.muli %arg0, %c1_i32 : i32
    %1 = arith.addi %0, %arg1 : i32
    %c0_i32 = arith.constant 0 : i32
    %2 = arith.minsi %1, %c0_i32 : i32
    %c0_i32_0 = arith.constant 0 : i32
    %c0_i32_1 = arith.constant 0 : i32
    return %2, %c0_i32_0 : i32, i32
  }
  func.func @transform_1(%arg0: i32, %arg1: i32) -> (i32, i32) {
    %c1_i32 = arith.constant 1 : i32
    %0 = arith.muli %arg0, %c1_i32 : i32
    %1 = arith.addi %0, %arg1 : i32
    %c0_i32 = arith.constant 0 : i32
    %2 = arith.minsi %1, %c0_i32 : i32
    %c0_i32_0 = arith.constant 0 : i32
    %c0_i32_1 = arith.constant 0 : i32
    return %2, %c0_i32_0 : i32, i32
  }
  func.func @transform_2(%arg0: i32, %arg1: i32) -> (i32, i32) {
    %c0_i32 = arith.constant 0 : i32
    %c0_i32_0 = arith.constant 0 : i32
    return %arg0, %c0_i32 : i32, i32
  }
}

</mosaic_0001>

<llo_original>
// kernel: tpu_custom_call.1
$region0: #{tpu_custom_call.1}
  #allocation0 [shape = 'u32[]', space=smem, size = 0x4, offset = 0x4, fixed_abs, tag = 'smem constant byte address 0x4 - core index']
  #allocation1 [shape = 'u32[72,128]{1,0:T(1,128)}', space=vmem, size = 0x9000, scoped, tag = 'internal scratch']
  %s0 = inlined_call_operand.vmem [shape: f32[50,16], index: 0, kind: input, shape index: {}]
  %s1 = inlined_call_operand.vmem [shape: s32[50,1], index: 1, kind: input, shape index: {}]
  %s2 = inlined_call_operand.hbm [shape: f32[1,1], index: 2, kind: output, shape index: {}]
  %s3 = sld [smem:[#allocation0]]
  $region22: #{tpu_custom_call.1} parent=0
    _
  %s5 = ssub.s32 1, %s3
  %s6 = scalar_select 0, %s5, %s3
  $region1: #{tpu_custom_call.1} parent=0
    #allocation2 [shape = 'u8[512]{0}', space=vmem, size = 0x400, scoped, tag = 'output window, operand 0, single buffered']
    #allocation3 [shape = 's32[1]{0}', space=sflag, size = 0x4, scoped, tag = 'scoped memory for tpu_custom_call.1']
    %7 = vsyncpa [#allocation3], 0
    // Predicated region
    $region2: #{tpu_custom_call.1} parent=1 // pred_check
      _
    $region3: #{tpu_custom_call.1} parent=1 // pred_check_branch
      %9 = sbr.rel (0) target = $region5
    $region4: #{tpu_custom_call.1} parent=1 // pred_region
      %s10 = sadd.s32 0, 0
      %p11 = scmp.lt.s32.totalorder %s10, 0
      %s12 = scalar_select %p11, %s10, 0
      %s13 = smul.u32 7, %s12
      %p14 = scmp.lt.s32.totalorder %s13, 6
      %s15 = scalar_select %p14, %s13, 6
      %s16 = smul.addr %s15, 8
      %s17 = scalar_lea.vmem %s0, %s16
      %s18 = sadd.s32 0, 0
      %p19 = scmp.lt.s32.totalorder %s18, 0
      %s20 = scalar_select %p19, %s18, 0
      %s21 = smul.u32 7, %s20
    $region5: #{tpu_custom_call.1} parent=1 // pred_fallthru
      _
    // Predicated region
    $region6: #{tpu_custom_call.1} parent=1 // pred_check
      _
    $region7: #{tpu_custom_call.1} parent=1 // pred_check_branch
      %23 = sbr.rel (0) target = $region9
    $region8: #{tpu_custom_call.1} parent=1 // pred_region
      %s24 = sadd.s32 0, 0
      %p25 = scmp.lt.s32.totalorder %s24, 0
      %s26 = scalar_select %p25, %s24, 0
      %s27 = smul.u32 7, %s26
      %p28 = scmp.lt.s32.totalorder %s27, 6
      %s29 = scalar_select %p28, %s27, 6
      %s30 = smul.addr %s29, 8
      %s31 = scalar_lea.vmem %s1, %s30
      %s32 = sadd.s32 0, 0
      %p33 = scmp.lt.s32.totalorder %s32, 0
      %s34 = scalar_select %p33, %s32, 0
      %s35 = smul.u32 7, %s34
    $region9: #{tpu_custom_call.1} parent=1 // pred_fallthru
      _
    %s36 = sadd.s32 0, 0
    %p37 = scmp.lt.s32.totalorder %s36, 0
    %s38 = scalar_select %p37, %s36, 0
    %s39 = smul.u32 7, %s38
    %p40 = scmp.lt.s32.totalorder %s39, 6
    %s41 = scalar_select %p40, %s39, 6
    %s42 = smul.addr %s41, 8
    %s43 = scalar_lea.vmem %s0, %s42
    %s44 = sadd.s32 0, 0
    %p45 = scmp.lt.s32.totalorder %s44, 0
    %s46 = scalar_select %p45, %s44, 0
    %s47 = smul.u32 7, %s46
    %p48 = scmp.lt.s32.totalorder %s47, 6
    %s49 = scalar_select %p48, %s47, 6
    %s50 = smul.addr %s49, 8
    %s51 = scalar_lea.vmem %s1, %s50
    %s52 = sadd.s32 0, 0
    %p53 = scmp.lt.s32.totalorder %s52, 0
    %s54 = scalar_select %p53, %s52, 0
    %s55 = smul.u32 7, %s54
    %p56 = scmp.lt.s32.totalorder %s55, 6
    %s57 = scalar_select %p56, %s55, 6
    %s58 = smul.addr %s57, 8
    %s59 = scalar_lea.vmem %s0, %s58
    %s60 = sadd.s32 0, 0
    %p61 = scmp.lt.s32.totalorder %s60, 0
    %s62 = scalar_select %p61, %s60, 0
    %s63 = smul.u32 7, %s62
    %s64 = sadd.s32 0, 0
    %p65 = scmp.lt.s32.totalorder %s64, 0
    %s66 = scalar_select %p65, %s64, 0
    %s67 = smul.u32 7, %s66
    %p68 = scmp.lt.s32.totalorder %s67, 6
    %s69 = scalar_select %p68, %s67, 6
    %s70 = smul.addr %s69, 8
    %s71 = scalar_lea.vmem %s1, %s70
    %s72 = sadd.s32 0, 0
    %p73 = scmp.lt.s32.totalorder %s72, 0
    %s74 = scalar_select %p73, %s72, 0
    %s75 = smul.u32 7, %s74
    %s76 = sadd.s32 0, 0
    %v77 = vld [vmem:[%s59] sm:$0xff]
    %v78 = vld [vmem:[%s59 + $0x8] sm:$0xff]
    %v79 = vld [vmem:[%s59 + $0x10] sm:$0xff]
    %v80 = vld [vmem:[%s59 + $0x18] sm:$0xff]
    %v81 = vld [vmem:[%s59 + $0x20] sm:$0xff]
    %v82 = vld [vmem:[%s59 + $0x28] sm:$0xff]
    %v83 = vld [vmem:[%s59 + $0x30] sm:$0xff]
    %v84 = vld [vmem:[%s71] sm:$0xff]
    %v85 = vld [vmem:[%s71 + $0x8] sm:$0xff]
    %v86 = vld [vmem:[%s71 + $0x10] sm:$0xff]
    %v87 = vld [vmem:[%s71 + $0x18] sm:$0xff]
    %v88 = vld [vmem:[%s71 + $0x20] sm:$0xff]
    %v89 = vld [vmem:[%s71 + $0x28] sm:$0xff]
    %v90 = vld [vmem:[%s71 + $0x30] sm:$0xff]
    %vm91 = vcmask 130048
    %v92 = vsel %vm91, %v77, -inf
    %93 = vmax.xlane.f32.xlu0 %v92
    %v94 = vpop.xlane.xlu0 %93
    %v95 = vsel %vm91, %v78, -inf
    %96 = vmax.xlane.f32.xlu0 %v95
    %v97 = vpop.xlane.xlu0 %96
    %v98 = vsel %vm91, %v79, -inf
    %99 = vmax.xlane.f32.xlu0 %v98
    %v100 = vpop.xlane.xlu0 %99
    %v101 = vsel %vm91, %v80, -inf
    %102 = vmax.xlane.f32.xlu0 %v101
    %v103 = vpop.xlane.xlu0 %102
    %v104 = vsel %vm91, %v81, -inf
    %105 = vmax.xlane.f32.xlu0 %v104
    %v106 = vpop.xlane.xlu0 %105
    %v107 = vsel %vm91, %v82, -inf
    %108 = vmax.xlane.f32.xlu0 %v107
    %v109 = vpop.xlane.xlu0 %108
    %v110 = vsel %vm91, %v83, -inf
    %111 = vmax.xlane.f32.xlu0 %v110
    %v112 = vpop.xlane.xlu0 %111
    %v113 = vsub.f32 %v77, %v94
    %v114 = vsub.f32 %v78, %v97
    %v115 = vsub.f32 %v79, %v100
    %v116 = vsub.f32 %v80, %v103
    %v117 = vsub.f32 %v81, %v106
    %v118 = vsub.f32 %v82, %v109
    %v119 = vsub.f32 %v83, %v112
    %v120 = vmul.f32 %v113, 1.442695
    %v121 = vpow.pop %v120
    %v122 = vmul.f32 %v114, 1.442695
    %v123 = vpow.pop %v122
    %v124 = vmul.f32 %v115, 1.442695
    %v125 = vpow.pop %v124
    %v126 = vmul.f32 %v116, 1.442695
    %v127 = vpow.pop %v126
    %v128 = vmul.f32 %v117, 1.442695
    %v129 = vpow.pop %v128
    %v130 = vmul.f32 %v118, 1.442695
    %v131 = vpow.pop %v130
    %v132 = vmul.f32 %v119, 1.442695
    %v133 = vpow.pop %v132
    %v134 = vsel %vm91, %v121, 0.0
    %135 = vadd.xlane.f32.xlu0 %v134
    %v136 = vpop.xlane.xlu0 %135
    %v137 = vsel %vm91, %v123, 0.0
    %138 = vadd.xlane.f32.xlu0 %v137
    %v139 = vpop.xlane.xlu0 %138
    %v140 = vsel %vm91, %v125, 0.0
    %141 = vadd.xlane.f32.xlu0 %v140
    %v142 = vpop.xlane.xlu0 %141
    %v143 = vsel %vm91, %v127, 0.0
    %144 = vadd.xlane.f32.xlu0 %v143
    %v145 = vpop.xlane.xlu0 %144
    %v146 = vsel %vm91, %v129, 0.0
    %147 = vadd.xlane.f32.xlu0 %v146
    %v148 = vpop.xlane.xlu0 %147
    %v149 = vsel %vm91, %v131, 0.0
    %150 = vadd.xlane.f32.xlu0 %v149
    %v151 = vpop.xlane.xlu0 %150
    %v152 = vsel %vm91, %v133, 0.0
    %153 = vadd.xlane.f32.xlu0 %v152
    %v154 = vpop.xlane.xlu0 %153
    %v155 = vlaneseq
    %v156 = vand.u32 %v155, 127
    %157 = vset.pattern.permute.xlu0 0
    %158 = vperm.xlu0 %157, %v84
    %v159 = vpop.permute.xlu0 %158
    %160 = vset.pattern.permute.xlu0 0
    %161 = vperm.xlu0 %160, %v85
    %v162 = vpop.permute.xlu0 %161
    %163 = vset.pattern.permute.xlu0 0
    %164 = vperm.xlu0 %163, %v86
    %v165 = vpop.permute.xlu0 %164
    %166 = vset.pattern.permute.xlu0 0
    %167 = vperm.xlu0 %166, %v87
    %v168 = vpop.permute.xlu0 %167
    %169 = vset.pattern.permute.xlu0 0
    %170 = vperm.xlu0 %169, %v88
    %v171 = vpop.permute.xlu0 %170
    %172 = vset.pattern.permute.xlu0 0
    %173 = vperm.xlu0 %172, %v89
    %v174 = vpop.permute.xlu0 %173
    %175 = vset.pattern.permute.xlu0 0
    %176 = vperm.xlu0 %175, %v90
    %v177 = vpop.permute.xlu0 %176
    %vm178 = vcmp.eq.s32.totalorder %v156, %v159
    %vm179 = vcmp.eq.s32.totalorder %v156, %v162
    %vm180 = vcmp.eq.s32.totalorder %v156, %v165
    %vm181 = vcmp.eq.s32.totalorder %v156, %v168
    %vm182 = vcmp.eq.s32.totalorder %v156, %v171
    %vm183 = vcmp.eq.s32.totalorder %v156, %v174
    %vm184 = vcmp.eq.s32.totalorder %v156, %v177
    %v185 = vsel %vm178, %v113, 0.0
    %v186 = vsel %vm179, %v114, 0.0
    %v187 = vsel %vm180, %v115, 0.0
    %v188 = vsel %vm181, %v116, 0.0
    %v189 = vsel %vm182, %v117, 0.0
    %v190 = vsel %vm183, %v118, 0.0
    %v191 = vsel %vm184, %v119, 0.0
    %v192 = vsel %vm91, %v185, 0.0
    %193 = vadd.xlane.f32.xlu0 %v192
    %v194 = vpop.xlane.xlu0 %193
    %v195 = vsel %vm91, %v186, 0.0
    %196 = vadd.xlane.f32.xlu0 %v195
    %v197 = vpop.xlane.xlu0 %196
    %v198 = vsel %vm91, %v187, 0.0
    %199 = vadd.xlane.f32.xlu0 %v198
    %v200 = vpop.xlane.xlu0 %199
    %v201 = vsel %vm91, %v188, 0.0
    %202 = vadd.xlane.f32.xlu0 %v201
    %v203 = vpop.xlane.xlu0 %202
    %v204 = vsel %vm91, %v189, 0.0
    %205 = vadd.xlane.f32.xlu0 %v204
    %v206 = vpop.xlane.xlu0 %205
    %v207 = vsel %vm91, %v190, 0.0
    %208 = vadd.xlane.f32.xlu0 %v207
    %v209 = vpop.xlane.xlu0 %208
    %v210 = vsel %vm91, %v191, 0.0
    %211 = vadd.xlane.f32.xlu0 %v210
    %v212 = vpop.xlane.xlu0 %211
    %v213 = vlog2.pop %v136
    %v214 = vmul.f32 %v213, 0.6931472
    %v215 = vlog2.pop %v139
    %v216 = vmul.f32 %v215, 0.6931472
    %v217 = vlog2.pop %v142
    %v218 = vmul.f32 %v217, 0.6931472
    %v219 = vlog2.pop %v145
    %v220 = vmul.f32 %v219, 0.6931472
    %v221 = vlog2.pop %v148
    %v222 = vmul.f32 %v221, 0.6931472
    %v223 = vlog2.pop %v151
    %v224 = vmul.f32 %v223, 0.6931472
    %v225 = vlog2.pop %v154
    %v226 = vmul.f32 %v225, 0.6931472
    %v227 = vsub.f32 %v214, %v194
    %v228 = vsub.f32 %v216, %v197
    %v229 = vsub.f32 %v218, %v200
    %v230 = vsub.f32 %v220, %v203
    %v231 = vsub.f32 %v222, %v206
    %v232 = vsub.f32 %v224, %v209
    %v233 = vsub.f32 %v226, %v212
    %v234 = vsub.f32 0.0, %v227
    %v235 = vsub.f32 0.0, %v228
    %v236 = vsub.f32 0.0, %v229
    %v237 = vsub.f32 0.0, %v230
    %v238 = vsub.f32 0.0, %v231
    %v239 = vsub.f32 0.0, %v232
    %v240 = vsub.f32 0.0, %v233
    %v241 = vmul.f32 %v234, 1.442695
    %v242 = vpow.pop %v241
    %v243 = vmul.f32 %v235, 1.442695
    %v244 = vpow.pop %v243
    %v245 = vmul.f32 %v236, 1.442695
    %v246 = vpow.pop %v245
    %v247 = vmul.f32 %v237, 1.442695
    %v248 = vpow.pop %v247
    %v249 = vmul.f32 %v238, 1.442695
    %v250 = vpow.pop %v249
    %v251 = vmul.f32 %v239, 1.442695
    %v252 = vpow.pop %v251
    %v253 = vmul.f32 %v240, 1.442695
    %v254 = vpow.pop %v253
    %v255 = vsub.f32 1.0, %v242
    %v256 = vsub.f32 1.0, %v244
    %v257 = vsub.f32 1.0, %v246
    %v258 = vsub.f32 1.0, %v248
    %v259 = vsub.f32 1.0, %v250
    %v260 = vsub.f32 1.0, %v252
    %v261 = vsub.f32 1.0, %v254
    %v262 = vmax.f32 %v255, 0.0
    %v263 = vmax.f32 %v256, 0.0
    %v264 = vmax.f32 %v257, 0.0
    %v265 = vmax.f32 %v258, 0.0
    %v266 = vmax.f32 %v259, 0.0
    %v267 = vmax.f32 %v260, 0.0
    %v268 = vmax.f32 %v261, 0.0
    %v269 = vmul.f32 %v262, %v262
    %v270 = vmul.f32 %v263, %v263
    %v271 = vmul.f32 %v264, %v264
    %v272 = vmul.f32 %v265, %v265
    %v273 = vmul.f32 %v266, %v266
    %v274 = vmul.f32 %v267, %v267
    %v275 = vmul.f32 %v268, %v268
    %v276 = vmul.f32 %v269, 0.25
    %v277 = vmul.f32 %v270, 0.25
    %v278 = vmul.f32 %v271, 0.25
    %v279 = vmul.f32 %v272, 0.25
    %v280 = vmul.f32 %v273, 0.25
    %v281 = vmul.f32 %v274, 0.25
    %v282 = vmul.f32 %v275, 0.25
    %v283 = vmul.f32 %v276, %v227
    %v284 = vmul.f32 %v277, %v228
    %v285 = vmul.f32 %v278, %v229
    %v286 = vmul.f32 %v279, %v230
    %v287 = vmul.f32 %v280, %v231
    %v288 = vmul.f32 %v281, %v232
    %v289 = vmul.f32 %v282, %v233
    %s290 = smul.u32 %s76, 56
    %v291 = vlaneseq
    %v292 = vshrl.u32 %v291, 7
    %v293 = vadd.s32 %v292, 8
    %v294 = vadd.s32 %v292, 16
    %v295 = vadd.s32 %v292, 24
    %v296 = vadd.s32 %v292, 32
    %v297 = vadd.s32 %v292, 40
    %v298 = vadd.s32 %v292, 48
    %v299 = vstv %s290
    %v300 = vadd.s32 %v299, %v292
    %v301 = vadd.s32 %v299, %v293
    %v302 = vadd.s32 %v299, %v294
    %v303 = vadd.s32 %v299, %v295
    %v304 = vadd.s32 %v299, %v296
    %v305 = vadd.s32 %v299, %v297
    %v306 = vadd.s32 %v299, %v298
    %vm307 = vcmp.lt.s32.totalorder %v300, 50
    %vm308 = vcmp.lt.s32.totalorder %v301, 50
    %vm309 = vcmp.lt.s32.totalorder %v302, 50
    %vm310 = vcmp.lt.s32.totalorder %v303, 50
    %vm311 = vcmp.lt.s32.totalorder %v304, 50
    %vm312 = vcmp.lt.s32.totalorder %v305, 50
    %vm313 = vcmp.lt.s32.totalorder %v306, 50
    %v314 = vsel %vm307, %v283, 0.0
    %v315 = vsel %vm308, %v284, 0.0
    %v316 = vsel %vm309, %v285, 0.0
    %v317 = vsel %vm310, %v286, 0.0
    %v318 = vsel %vm311, %v287, 0.0
    %v319 = vsel %vm312, %v288, 0.0
    %v320 = vsel %vm313, %v289, 0.0
    %p321 = scmp.eq.s32.totalorder 0, 0
    // Predicated region
    $region10: #{tpu_custom_call.1} parent=1 // pred_check
      %p322 = pneg %p321
    $region11: #{tpu_custom_call.1} parent=1 // pred_check_branch
      %324 = sbr.rel (%p322) target = $region13
    $region12: #{tpu_custom_call.1} parent=1 // pred_region
      %vm325 = vcmask 0
      %326 = vst.msk [vmem:[#allocation2] sm:$0x1] %vm325, 0.0
    $region13: #{tpu_custom_call.1} parent=1 // pred_fallthru
      _
    %v327 = vld [vmem:[#allocation2] sm:$0x1]
    %v328 = vadd.f32 %v314, %v315
    %v329 = vadd.f32 %v328, %v316
    %v330 = vadd.f32 %v329, %v317
    %v331 = vadd.f32 %v330, %v318
    %v332 = vadd.f32 %v331, %v319
    %v333 = vadd.f32 %v332, %v320
    %v334 = vrot.slane %v333, 4
    %v335 = vadd.f32 %v333, %v334
    %v336 = vrot.slane %v335, 2
    %v337 = vadd.f32 %v335, %v336
    %v338 = vrot.slane %v337, 1
    %v339 = vadd.f32 %v337, %v338
    %v340 = vadd.f32 %v327, %v339
    %vm341 = vcmask 0
    %342 = vst.msk [vmem:[#allocation2] sm:$0x1] %vm341, %v340
    // Predicated region
    $region14: #{tpu_custom_call.1} parent=1 // pred_check
      _
    $region15: #{tpu_custom_call.1} parent=1 // pred_check_branch
      %344 = sbr.rel (0) target = $region17
    $region16: #{tpu_custom_call.1} parent=1 // pred_region
      %346 = vsyncadd [#allocation3], 0
      %s348 = sshll.u32 [#allocation2], 4
      %s349 = int_to_ptr.vmem [resolvable:$true] %s348
      %s350 = sshll.u32 %s2, 4
      %s351 = int_to_ptr.hbm [resolvable:$true] %s350
      %353 = dma.vmem_to_hbm [thread:$0]  %s349, 16, %s351, [#allocation3]
    $region17: #{tpu_custom_call.1} parent=1 // pred_fallthru
      _
    // Predicated region
    $region18: #{tpu_custom_call.1} parent=1 // pred_check
      _
    $region19: #{tpu_custom_call.1} parent=1 // pred_check_branch
      %355 = sbr.rel (0) target = $region21
    $region20: #{tpu_custom_call.1} parent=1 // pred_region
      %357 = dma.done [#allocation3], 16
    $region21: #{tpu_custom_call.1} parent=1 // pred_fallthru
      _
    %358 = vsyncpa [#allocation3], 1

</llo_original>
